<compile_context>
chip_gen: v6e
topology: v6e:2x2x1
jax: 0.10.0
libtpu: 0.0.40
codegen_flags: <defaults>
</compile_context>

<pallas_src>
import math
from typing import NamedTuple

import numpy as np
import jax
import jax.numpy as jnp
from jax.experimental import pallas as pl
from jax.experimental.pallas import tpu as pltpu

_PROTATE_PI = 3.1415926235897933          # matches the (typo'd) constant in the reference
_VMEM_LIMIT_BYTES = 48 * 1024 * 1024      # safe on v5e/v6e (128 MiB) and v7x (64 MiB)


class KGEConfig(NamedTuple):
    """Static (hashable) hyper-parameters -> usable as a jax.jit static arg."""
    model_name: str
    gamma: float
    embedding_range: float
    modulus: float = 0.0


# ----------------------------------------------------------------------------
# Shared in-kernel scoring math
# ----------------------------------------------------------------------------
def _contract(big3, q3, use_mxu):
    """sum_d big3[b, n, d] * q3[b, 0, d]  ->  (tb, tn, 1) float32.

    use_mxu=True: einsum with the big block as LHS (M = tn rows stream through
    the MXU, no transpose of the big block; the tiny RHS carries the
    contracting-minor layout).  use_mxu=False: VPU/XLU lane reduce (preferred
    on v5e, whose MXU has no native f32 path and which is HBM-bound anyway).
    """
    tb, tn, d = big3.shape
    if use_mxu:
        if q3 is None:
            q3 = jnp.ones((tb, 1, d), dtype=big3.dtype)
        return jnp.einsum('bnd,bqd->bnq', big3, q3,
                          preferred_element_type=jnp.float32)
    if q3 is None:
        return jnp.sum(big3.astype(jnp.float32), axis=-1, keepdims=True)
    return jnp.sum(big3.astype(jnp.float32) * q3.astype(jnp.float32),
                   axis=-1, keepdims=True)


def _score_block(cfg, head_batch, use_mxu, pos, rel, neg3):
    """Score one tile.

    pos  : (tb, De)      positive-side entity (tail for head-batch, head else), f32
    rel  : (tb, Dr)      relation embedding, f32
    neg3 : (tb, tn, De)  negative-sample entities, native (f32 or bf16) dtype
    returns (tb, tn, 1) f32 scores.
    """
    name = cfg.model_name
    gamma = cfg.gamma
    er = cfg.embedding_range

    if name == 'TransE':
        negf = neg3.astype(jnp.float32)
        q = (rel - pos) if head_batch else (pos + rel)
        s = negf + q[:, None, :] if head_batch else q[:, None, :] - negf
        return gamma - _contract(jnp.abs(s), None, use_mxu)

    if name == 'DistMult':
        # score = <pos * rel, neg>; the multiply-and-sum runs on the MXU.
        q3 = (pos * rel)[:, None, :].astype(neg3.dtype)
        return _contract(neg3, q3, use_mxu)

    if name == 'ComplEx':
        D = pos.shape[-1] // 2
        re_p, im_p = pos[:, :D], pos[:, D:]
        re_r, im_r = rel[:, :D], rel[:, D:]
        if head_batch:                       # pos = tail, neg = head
            re_q = re_r * re_p + im_r * im_p
            im_q = re_r * im_p - im_r * re_p
        else:                                # pos = head, neg = tail
            re_q = re_p * re_r - im_p * im_r
            im_q = re_p * im_r + im_p * re_r
        q3 = jnp.concatenate([re_q, im_q], axis=-1)[:, None, :].astype(neg3.dtype)
        return _contract(neg3, q3, use_mxu)

    if name == 'RotatE':
        negf = neg3.astype(jnp.float32)
        D = pos.shape[-1] // 2
        phase = rel * (math.pi / er)
        re_r, im_r = jnp.cos(phase), jnp.sin(phase)
        re_p, im_p = pos[:, :D], pos[:, D:]
        re_n, im_n = negf[..., :D], negf[..., D:]
        if head_batch:                       # pos = tail, neg = head
            re_q = re_r * re_p + im_r * im_p
            im_q = re_r * im_p - im_r * re_p
        else:                                # pos = head, neg = tail
            re_q = re_p * re_r - im_p * im_r
            im_q = re_p * im_r + im_p * re_r
        re_s = re_q[:, None, :] - re_n
        im_s = im_q[:, None, :] - im_n
        dist = jnp.sqrt(re_s * re_s + im_s * im_s)
        return gamma - _contract(dist, None, use_mxu)

    if name == 'pRotatE':
        negf = neg3.astype(jnp.float32)
        scale = _PROTATE_PI / er
        q = (rel - pos) * scale if head_batch else (pos + rel) * scale
        s = negf * scale + q[:, None, :] if head_batch else q[:, None, :] - negf * scale
        return gamma - _contract(jnp.abs(jnp.sin(s)), None, use_mxu) * cfg.modulus

    raise ValueError('model %s not supported' % name)


# ----------------------------------------------------------------------------
# Pallas kernels
# ----------------------------------------------------------------------------
def make_fused_batch_kernel(cfg, mode, use_mxu, tb, tn, De):
    """head-/tail-batch scoring with the negative gather fused into the kernel.

    Kernel refs per grid step (i = batch tile, j = negative-sample tile):
      idx_ref : (B, N) int32 in SMEM (scalar prefetch) - negative entity ids
      pos_ref : (tb, De)    positive-side entity rows
      rel_ref : (tb, Dr)    relation rows
      ent_ref : (nentity, De) entity table, left in HBM (memory_space=pl.ANY)
      out_ref : (tb, tn, 1) scores
      nbuf    : (tb*tn, De) VMEM scratch for the gathered negative rows
      sem     : DMA semaphore
    """
    head_batch = (mode == 'head-batch')
    rows = tb * tn

    def kernel(idx_ref, pos_ref, rel_ref, ent_ref, out_ref, nbuf, sem):
        i = pl.program_id(0)       # batch tile
        j = pl.program_id(1)       # negative-sample tile

        # Gather this tile's tb*tn negative-entity rows HBM -> VMEM, one DMA
        # per row (indices read from the SMEM scalar-prefetch ref).
        # TODO(synk): split the tile into two batch halves and double-buffer
        # the row DMAs against compute.
        @pl.loop(0, rows)
        def _start(r):
            b = r // tn
            n = r - b * tn
            e = idx_ref[i * tb + b, j * tn + n]
            pltpu.make_async_copy(ent_ref.at[pl.ds(e, 1)],
                                  nbuf.at[pl.ds(r, 1)],
                                  sem.at[0]).start()

        @pl.loop(0, rows)
        def _wait(r):
            # Same-shaped descriptor: decrements the shared DMA semaphore by
            # one row-copy per iteration.
            pltpu.make_async_copy(ent_ref.at[pl.ds(0, 1)],
                                  nbuf.at[pl.ds(0, 1)],
                                  sem.at[0]).wait()

        neg3 = nbuf[...].reshape(tb, tn, De)   # leading-dim split: no relayout
        pos = pos_ref[...].astype(jnp.float32)
        rel = rel_ref[...].astype(jnp.float32)
        out_ref[...] = _score_block(cfg, head_batch, use_mxu, pos, rel, neg3)

    return kernel


def make_streamed_batch_kernel(cfg, mode, use_mxu):
    """head-/tail-batch scoring with the (B, N, De) negatives pre-gathered by
    XLA and streamed through BlockSpec pipelining (preferable when rows are
    small and per-row DMA gather would be issue-bound)."""
    head_batch = (mode == 'head-batch')

    def kernel(pos_ref, rel_ref, neg_ref, out_ref):
        out_ref[...] = _score_block(cfg, head_batch, use_mxu,
                                    pos_ref[...].astype(jnp.float32),
                                    rel_ref[...].astype(jnp.float32),
                                    neg_ref[...])
    return kernel


def make_single_kernel(cfg):
    """mode == 'single' (one negative): squeezed 2-D refs, tiny output."""
    name, gamma, er, modulus = (cfg.model_name, cfg.gamma,
                                cfg.embedding_range, cfg.modulus)

    def kernel(head_ref, rel_ref, tail_ref, out_ref):
        head = head_ref[...].astype(jnp.float32)
        rel = rel_ref[...].astype(jnp.float32)
        tail = tail_ref[...].astype(jnp.float32)

        if name == 'TransE':
            s = head + rel - tail
            out_ref[...] = gamma - jnp.sum(jnp.abs(s), axis=-1, keepdims=True)
        elif name == 'DistMult':
            out_ref[...] = jnp.sum(head * rel * tail, axis=-1, keepdims=True)
        elif name == 'ComplEx':
            D = head.shape[-1] // 2
            re_h, im_h = head[:, :D], head[:, D:]
            re_r, im_r = rel[:, :D], rel[:, D:]
            re_t, im_t = tail[:, :D], tail[:, D:]
            re_s = re_h * re_r - im_h * im_r
            im_s = re_h * im_r + im_h * re_r
            out_ref[...] = jnp.sum(re_s * re_t + im_s * im_t,
                                   axis=-1, keepdims=True)
        elif name == 'RotatE':
            D = head.shape[-1] // 2
            re_h, im_h = head[:, :D], head[:, D:]
            re_t, im_t = tail[:, :D], tail[:, D:]
            phase = rel * (math.pi / er)
            re_r, im_r = jnp.cos(phase), jnp.sin(phase)
            re_s = re_h * re_r - im_h * im_r - re_t
            im_s = re_h * im_r + im_h * re_r - im_t
            dist = jnp.sqrt(re_s * re_s + im_s * im_s)
            out_ref[...] = gamma - jnp.sum(dist, axis=-1, keepdims=True)
        elif name == 'pRotatE':
            scale = _PROTATE_PI / er
            s = (head + rel - tail) * scale
            out_ref[...] = (gamma - jnp.sum(jnp.abs(jnp.sin(s)),
                                            axis=-1, keepdims=True) * modulus)
        else:
            raise ValueError('model %s not supported' % name)

    return kernel


# ----------------------------------------------------------------------------
# Tiling / cost helpers + pallas_call wrappers
# ----------------------------------------------------------------------------
def _largest_divisor(n, cap, multiple):
    """Largest divisor of n that is a multiple of `multiple` and <= cap; falls
    back to n itself (full-extent block is always legal)."""
    cap = int(max(multiple, min(cap, n)))
    cap -= cap % multiple
    for v in range(cap, multiple - 1, -multiple):
        if n % v == 0:
            return v
    return n


def _pick_tiles(B, N, De, itemsize, model_name):
    """Pick (tb, tn) so the (tb, tn, De) negative tile is MiB-scale, the batch
    grid axis has >= 4 steps when B allows (pipelining depth on v7x), and the
    sublane (8) / lane (128) tiling constraints hold."""
    if model_name in ('DistMult', 'ComplEx'):
        target = 8 * 1024 * 1024     # few temporaries -> bigger tiles
    else:
        target = 4 * 1024 * 1024     # RotatE/pRotatE keep several f32 temps alive

    tn = N
    if N > 128:
        cap_n = max(128, target // max(De * itemsize, 1))
        tn = _largest_divisor(N, cap_n, 128)

    if B % 8 != 0:
        tb = B
    else:
        cap_b = max(8, min(B // 4, target // max(tn * De * itemsize, 1)))
        tb = _largest_divisor(B, cap_b, 8)
    return tb, tn


def _cost_estimate(model_name, B, N, De, Dr, itemsize):
    bytes_accessed = B * N * De * itemsize + B * (De + Dr) * itemsize + B * N * 4
    flops = 6 * B * N * De
    transcendentals = 0
    if model_name == 'RotatE':
        transcendentals = 2 * B * Dr + B * N * (De // 2)
    elif model_name == 'pRotatE':
        transcendentals = B * N * De
    return pl.CostEstimate(flops=flops, transcendentals=transcendentals,
                           bytes_accessed=bytes_accessed)


def _default_use_mxu():
    kind = jax.devices()[0].device_kind.lower()
    # v5e's MXU is bf16-only (an f32 contraction becomes a multi-pass
    # decomposition) and the kernel is HBM-bound there anyway, so keep the
    # reduce on the VPU/XLU on that generation.
    if 'v5 lite' in kind or 'v5lite' in kind or 'v5e' in kind:
        return False
    return True


def _score_batch_fused(cfg, ent_table, pos, relation, neg_idx, mode, use_mxu):
    """head-/tail-batch scoring with the negative gather fused into the kernel."""
    B, N = neg_idx.shape
    De = ent_table.shape[1]
    Dr = relation.shape[1]
    itemsize = ent_table.dtype.itemsize
    tb, tn = _pick_tiles(B, N, De, itemsize, cfg.model_name)

    kernel = make_fused_batch_kernel(cfg, mode, use_mxu, tb, tn, De)
    out = pl.pallas_call(
        kernel,
        out_shape=jax.ShapeDtypeStruct((B, N, 1), jnp.float32),
        grid_spec=pltpu.PrefetchScalarGridSpec(
            num_scalar_prefetch=1,
            grid=(B // tb, N // tn),
            in_specs=[
                pl.BlockSpec((tb, De), lambda i, j, idx: (i, 0)),
                pl.BlockSpec((tb, Dr), lambda i, j, idx: (i, 0)),
                pl.BlockSpec(memory_space=pl.ANY),       # entity table in HBM
            ],
            out_specs=pl.BlockSpec((tb, tn, 1), lambda i, j, idx: (i, j, 0)),
            scratch_shapes=[
                pltpu.VMEM((tb * tn, De), ent_table.dtype),
                pltpu.SemaphoreType.DMA((1,)),
            ]),
        compiler_params=pltpu.CompilerParams(
            dimension_semantics=("parallel", "parallel"),
            vmem_limit_bytes=_VMEM_LIMIT_BYTES),
        cost_estimate=_cost_estimate(cfg.model_name, B, N, De, Dr, itemsize),
    )(neg_idx.astype(jnp.int32), pos, relation, ent_table)
    return out.reshape(B, N)


def _score_batch_streamed(cfg, pos, relation, neg, mode, use_mxu):
    """head-/tail-batch scoring from a pre-gathered (B, N, De) negative tensor."""
    B, N, De = neg.shape
    Dr = relation.shape[1]
    itemsize = neg.dtype.itemsize
    tb, tn = _pick_tiles(B, N, De, itemsize, cfg.model_name)

    kernel = make_streamed_batch_kernel(cfg, mode, use_mxu)
    out = pl.pallas_call(
        kernel,
        out_shape=jax.ShapeDtypeStruct((B, N, 1), jnp.float32),
        grid_spec=pltpu.PrefetchScalarGridSpec(
            num_scalar_prefetch=0,
            grid=(B // tb, N // tn),
            in_specs=[
                pl.BlockSpec((tb, De), lambda i, j: (i, 0)),
                pl.BlockSpec((tb, Dr), lambda i, j: (i, 0)),
                pl.BlockSpec((tb, tn, De), lambda i, j: (i, j, 0)),
            ],
            out_specs=pl.BlockSpec((tb, tn, 1), lambda i, j: (i, j, 0))),
        compiler_params=pltpu.CompilerParams(
            dimension_semantics=("parallel", "parallel"),
            vmem_limit_bytes=_VMEM_LIMIT_BYTES),
        cost_estimate=_cost_estimate(cfg.model_name, B, N, De, Dr, itemsize),
    )(pos, relation, neg)
    return out.reshape(B, N)


def _score_single(cfg, head, relation, tail):
    """mode == 'single': head/tail (B, De), relation (B, Dr) -> (B, 1)."""
    B, De = head.shape
    Dr = relation.shape[1]
    tb = B if B % 8 else _largest_divisor(B, 512, 8)
    kernel = make_single_kernel(cfg)
    return pl.pallas_call(
        kernel,
        out_shape=jax.ShapeDtypeStruct((B, 1), jnp.float32),
        grid_spec=pltpu.PrefetchScalarGridSpec(
            num_scalar_prefetch=0,
            grid=(B // tb,),
            in_specs=[
                pl.BlockSpec((tb, De), lambda i: (i, 0)),
                pl.BlockSpec((tb, Dr), lambda i: (i, 0)),
                pl.BlockSpec((tb, De), lambda i: (i, 0)),
            ],
            out_specs=pl.BlockSpec((tb, 1), lambda i: (i, 0))),
        compiler_params=pltpu.CompilerParams(
            dimension_semantics=("parallel",),
            vmem_limit_bytes=_VMEM_LIMIT_BYTES),
        cost_estimate=_cost_estimate(cfg.model_name, B, 1, De, Dr,
                                     head.dtype.itemsize),
    )(head, relation, tail)


# ----------------------------------------------------------------------------
# Parameter init + forward (mirrors KGEModel.forward)
# ----------------------------------------------------------------------------
def init_params(key, model_name, nentity, nrelation, hidden_dim, gamma,
                double_entity_embedding=False, double_relation_embedding=False,
                param_dtype=jnp.float32):
    epsilon = 2.0
    embedding_range = (gamma + epsilon) / hidden_dim
    entity_dim = hidden_dim * 2 if double_entity_embedding else hidden_dim
    relation_dim = hidden_dim * 2 if double_relation_embedding else hidden_dim
    k1, k2 = jax.random.split(key)
    ent = jax.random.uniform(k1, (nentity, entity_dim), jnp.float32,
                             minval=-embedding_range, maxval=embedding_range)
    rel = jax.random.uniform(k2, (nrelation, relation_dim), jnp.float32,
                             minval=-embedding_range, maxval=embedding_range)
    params = dict(entity_embedding=ent.astype(param_dtype),
                  relation_embedding=rel.astype(param_dtype))
    modulus = 0.5 * embedding_range if model_name == 'pRotatE' else 0.0
    cfg = KGEConfig(model_name=model_name, gamma=float(gamma),
                    embedding_range=float(embedding_range),
                    modulus=float(modulus))
    return cfg, params


def kge_forward(params, sample, *, cfg, mode='single', fuse_gather=True,
                use_mxu=None):
    """Mirrors KGEModel.forward.  Statics (cfg/mode/fuse_gather/use_mxu) are
    jit-static; the negative gather is fused into the Pallas kernel when
    fuse_gather=True."""
    if use_mxu is None:
        use_mxu = _default_use_mxu()
    ent = params['entity_embedding']
    rel_emb = params['relation_embedding']

    if mode == 'single':
        head = ent[sample[:, 0]]
        relation = rel_emb[sample[:, 1]]
        tail = ent[sample[:, 2]]
        return _score_single(cfg, head, relation, tail)

    if mode == 'head-batch':
        tail_part, head_part = sample
        pos = ent[tail_part[:, 2]]                 # tails  (positive side)
        relation = rel_emb[tail_part[:, 1]]
        if fuse_gather:
            return _score_batch_fused(cfg, ent, pos, relation, head_part,
                                      mode, use_mxu)
        B, N = head_part.shape
        neg = ent[head_part.reshape(-1)].reshape(B, N, -1)
        return _score_batch_streamed(cfg, pos, relation, neg, mode, use_mxu)

    if mode == 'tail-batch':
        head_part, tail_part = sample
        pos = ent[head_part[:, 0]]                 # heads  (positive side)
        relation = rel_emb[head_part[:, 1]]
        if fuse_gather:
            return _score_batch_fused(cfg, ent, pos, relation, tail_part,
                                      mode, use_mxu)
        B, N = tail_part.shape
        neg = ent[tail_part.reshape(-1)].reshape(B, N, -1)
        return _score_batch_streamed(cfg, pos, relation, neg, mode, use_mxu)

    raise ValueError('mode %s not supported' % mode)


# ----------------------------------------------------------------------------
# Pure-JAX reference (same math as the PyTorch module) for validation
# ----------------------------------------------------------------------------
def gather_embeddings(params, sample, mode):
    ent = params['entity_embedding'].astype(jnp.float32)
    rel_emb = params['relation_embedding'].astype(jnp.float32)
    if mode == 'single':
        p = sample
        return (ent[p[:, 0]][:, None, :], rel_emb[p[:, 1]],
                ent[p[:, 2]][:, None, :])
    if mode == 'head-batch':
        tail_part, head_part = sample
        B, N = head_part.shape
        return (ent[head_part.reshape(-1)].reshape(B, N, -1),
                rel_emb[tail_part[:, 1]], ent[tail_part[:, 2]][:, None, :])
    head_part, tail_part = sample
    B, N = tail_part.shape
    return (ent[head_part[:, 0]][:, None, :], rel_emb[head_part[:, 1]],
            ent[tail_part.reshape(-1)].reshape(B, N, -1))


def reference_score(cfg, head, relation, tail, mode):
    gamma, er = cfg.gamma, cfg.embedding_range
    rel = relation[:, None, :]
    name = cfg.model_name
    if name == 'TransE':
        s = head + (rel - tail) if mode == 'head-batch' else head + rel - tail
        return gamma - jnp.sum(jnp.abs(s), axis=2)
    if name == 'DistMult':
        s = head * (rel * tail) if mode == 'head-batch' else head * rel * tail
        return jnp.sum(s, axis=2)
    if name == 'ComplEx':
        D = head.shape[-1] // 2
        re_h, im_h = head[..., :D], head[..., D:]
        re_r, im_r = rel[..., :D], rel[..., D:]
        re_t, im_t = tail[..., :D], tail[..., D:]
        if mode == 'head-batch':
            re_s = re_r * re_t + im_r * im_t
            im_s = re_r * im_t - im_r * re_t
            s = re_h * re_s + im_h * im_s
        else:
            re_s = re_h * re_r - im_h * im_r
            im_s = re_h * im_r + im_h * re_r
            s = re_s * re_t + im_s * im_t
        return jnp.sum(s, axis=2)
    if name == 'RotatE':
        pi = 3.141592653589793
        D = head.shape[-1] // 2
        re_h, im_h = head[..., :D], head[..., D:]
        re_t, im_t = tail[..., :D], tail[..., D:]
        phase = rel / (er / pi)
        re_r, im_r = jnp.cos(phase), jnp.sin(phase)
        if mode == 'head-batch':
            re_s = re_r * re_t + im_r * im_t - re_h
            im_s = re_r * im_t - im_r * re_t - im_h
        else:
            re_s = re_h * re_r - im_h * im_r - re_t
            im_s = re_h * im_r + im_h * re_r - im_t
        dist = jnp.sqrt(re_s ** 2 + im_s ** 2)
        return gamma - jnp.sum(dist, axis=2)
    if name == 'pRotatE':
        pi = _PROTATE_PI
        ph_h, ph_r, ph_t = head / (er / pi), rel / (er / pi), tail / (er / pi)
        s = ph_h + (ph_r - ph_t) if mode == 'head-batch' else ph_h + ph_r - ph_t
        s = jnp.abs(jnp.sin(s))
        return gamma - jnp.sum(s, axis=2) * cfg.modulus
    raise ValueError(name)


# ----------------------------------------------------------------------------
if __name__ == "__main__":
    nentity, nrelation, hidden_dim, gamma = 512, 64, 128, 12.0
    B, N = 16, 128

    key = jax.random.PRNGKey(0)
    k_pos, k_neg, k_params = jax.random.split(key, 3)

    pos_triples = jnp.stack([
        jax.random.randint(jax.random.fold_in(k_pos, 0), (B,), 0, nentity),
        jax.random.randint(jax.random.fold_in(k_pos, 1), (B,), 0, nrelation),
        jax.random.randint(jax.random.fold_in(k_pos, 2), (B,), 0, nentity),
    ], axis=1).astype(jnp.int32)                              # (B, 3)
    neg_ids = jax.random.randint(k_neg, (B, N), 0, nentity).astype(jnp.int32)

    fwd = jax.jit(kge_forward,
                  static_argnames=('cfg', 'mode', 'fuse_gather', 'use_mxu'))

    configs = [
        ('TransE',   dict()),
        ('DistMult', dict()),
        ('ComplEx',  dict(double_entity_embedding=True,
                          double_relation_embedding=True)),
        ('RotatE',   dict(double_entity_embedding=True)),
        ('pRotatE',  dict()),
    ]
    modes = [('single', pos_triples),
             ('tail-batch', (pos_triples, neg_ids)),
             ('head-batch', (pos_triples, neg_ids))]

    failures = []

    def check(tag, cfg, params, sample, mode, rtol, atol, **kw):
        score = fwd(params, sample, cfg=cfg, mode=mode, **kw)
        score = jax.block_until_ready(score)
        h, r, t = gather_embeddings(params, sample, mode)
        ref = reference_score(cfg, h, r, t, mode)
        expected = (sample.shape[0], 1) if mode == 'single' else tuple(sample[1].shape)
        s_np = np.asarray(score, dtype=np.float32)
        r_np = np.asarray(ref, dtype=np.float32)
        ok = score.shape == expected and np.allclose(s_np, r_np, rtol=rtol, atol=atol)
        if not ok:
            err = float(np.max(np.abs(s_np - r_np))) if score.shape == expected else -1.0
            failures.append(f"{tag}: shape={score.shape} max_err={err:.4g}")
        return score

    inited = {}
    for idx, (model_name, kw) in enumerate(configs):
        cfg, params = init_params(jax.random.fold_in(k_params, idx),
                                  model_name, nentity, nrelation, hidden_dim,
                                  gamma, **kw)
        inited[model_name] = (cfg, params)
        for mode, sample in modes:
            check(f"{model_name}/{mode}/fused", cfg, params, sample, mode,
                  rtol=2e-3, atol=5e-3)

    # Extra coverage: streamed (pre-gathered) path and the pure VPU/XLU reduce.
    cfg_t, params_t = inited['TransE']
    check("TransE/tail-batch/streamed-noMXU", cfg_t, params_t,
          (pos_triples, neg_ids), 'tail-batch', rtol=2e-3, atol=5e-3,
          fuse_gather=False, use_mxu=False)
    cfg_d, params_d = inited['DistMult']
    check("DistMult/tail-batch/streamed", cfg_d, params_d,
          (pos_triples, neg_ids), 'tail-batch', rtol=2e-3, atol=5e-3,
          fuse_gather=False)

    # bf16 embedding tables: halves HBM traffic of the dominant gather and
    # feeds bf16 operands to the MXU (f32 accumulation).
    params_bf16 = {k: v.astype(jnp.bfloat16) for k, v in params_d.items()}
    check("DistMult/tail-batch/fused-bf16", cfg_d, params_bf16,
          (pos_triples, neg_ids), 'tail-batch', rtol=2e-2, atol=2e-2)

    if failures:
        for f in failures:
            print("MISMATCH:", f)
    else:
        print("KERNEL_OK")
</pallas_src>

<mosaic_0001>
module attributes {stable_mosaic.version = 11 : i64} {
  func.func @kernel(%arg0: i32, %arg1: memref<16x128xf32, #tpu.memory_space<vmem>>, %arg2: memref<16x128xf32, #tpu.memory_space<vmem>>, %arg3: memref<16x128xf32, #tpu.memory_space<vmem>>, %arg4: memref<16x1xf32, #tpu.memory_space<vmem>>) attributes {dimension_semantics = [#tpu.dimension_semantics<parallel>], iteration_bounds = array<i64: 1>, scalar_prefetch = 0 : i64, scratch_operands = 0 : i64, tpu.core_type = #tpu.core_type<tc>, window_params = [{transform_indices = @transform_0, window_bounds = array<i64: 16, 128>}, {transform_indices = @transform_1, window_bounds = array<i64: 16, 128>}, {transform_indices = @transform_2, window_bounds = array<i64: 16, 128>}, {transform_indices = @transform_3, window_bounds = array<i64: 16, 1>}]} {
    %c0 = arith.constant 0 : index
    %c0_0 = arith.constant 0 : index
    %0 = vector.load %arg1[%c0, %c0_0] : memref<16x128xf32, #tpu.memory_space<vmem>>, vector<16x128xf32>
    %c0_1 = arith.constant 0 : index
    %c0_2 = arith.constant 0 : index
    %1 = vector.load %arg2[%c0_1, %c0_2] : memref<16x128xf32, #tpu.memory_space<vmem>>, vector<16x128xf32>
    %c0_3 = arith.constant 0 : index
    %c0_4 = arith.constant 0 : index
    %2 = vector.load %arg3[%c0_3, %c0_4] : memref<16x128xf32, #tpu.memory_space<vmem>>, vector<16x128xf32>
    %3 = arith.addf %0, %1 : vector<16x128xf32>
    %4 = arith.subf %3, %2 : vector<16x128xf32>
    %5 = math.absf %4 : vector<16x128xf32>
    %cst = arith.constant dense<0.000000e+00> : vector<16xf32>
    %6 = vector.multi_reduction <add>, %5, %cst [1] : vector<16x128xf32> to vector<16xf32>
    %7 = vector.shape_cast %6 : vector<16xf32> to vector<16x1xf32>
    %cst_5 = arith.constant 1.200000e+01 : f32
    %8 = vector.broadcast %cst_5 : f32 to vector<16x1xf32>
    %9 = arith.subf %8, %7 : vector<16x1xf32>
    %c0_6 = arith.constant 0 : index
    %c0_7 = arith.constant 0 : index
    %10 = vector.load %arg4[%c0_6, %c0_7] : memref<16x1xf32, #tpu.memory_space<vmem>>, vector<16x1xf32>
    tpu.vector_store %arg4[%c0_6, %c0_7], %9 {strides = array<i32>} : memref<16x1xf32, #tpu.memory_space<vmem>>, vector<16x1xf32>,
    return
  }
  func.func @transform_0(%arg0: i32) -> (i32, i32) {
    %c0_i32 = arith.constant 0 : i32
    %c0_i32_0 = arith.constant 0 : i32
    return %arg0, %c0_i32 : i32, i32
  }
  func.func @transform_1(%arg0: i32) -> (i32, i32) {
    %c0_i32 = arith.constant 0 : i32
    %c0_i32_0 = arith.constant 0 : i32
    return %arg0, %c0_i32 : i32, i32
  }
  func.func @transform_2(%arg0: i32) -> (i32, i32) {
    %c0_i32 = arith.constant 0 : i32
    %c0_i32_0 = arith.constant 0 : i32
    return %arg0, %c0_i32 : i32, i32
  }
  func.func @transform_3(%arg0: i32) -> (i32, i32) {
    %c0_i32 = arith.constant 0 : i32
    %c0_i32_0 = arith.constant 0 : i32
    return %arg0, %c0_i32 : i32, i32
  }
}

</mosaic_0001>

<llo_original>
// kernel: kge_forward.1
$region0: #{kge_forward.1}
  #allocation0 [shape = 'u32[]', space=smem, size = 0x4, offset = 0x4, fixed_abs, tag = 'smem constant byte address 0x4 - core index']
  #allocation1 [shape = 'u32[144,128]{1,0:T(1,128)}', space=vmem, size = 0x12000, scoped, tag = 'internal scratch']
  %s0 = inlined_call_operand.vmem [shape: f32[16,128], index: 0, kind: input, shape index: {}]
  %s1 = inlined_call_operand.vmem [shape: f32[16,128], index: 1, kind: input, shape index: {}]
  %s2 = inlined_call_operand.vmem [shape: f32[16,128], index: 2, kind: input, shape index: {}]
  %s3 = inlined_call_operand.vmem [shape: f32[16,1], index: 3, kind: output, shape index: {}]
  %s4 = sld [smem:[#allocation0]]
  $region22: #{kge_forward.1} parent=0
    _
  %s6 = ssub.s32 1, %s4
  %s7 = scalar_select 0, %s6, %s4
  // Predicated region
  $region2: #{kge_forward.1} parent=0 // pred_check
    _
  $region3: #{kge_forward.1} parent=0 // pred_check_branch
    %9 = sbr.rel (0) target = $region5
  $region4: #{kge_forward.1} parent=0 // pred_region
    _
  $region5: #{kge_forward.1} parent=0 // pred_fallthru
    _
  // Predicated region
  $region6: #{kge_forward.1} parent=0 // pred_check
    _
  $region7: #{kge_forward.1} parent=0 // pred_check_branch
    %11 = sbr.rel (0) target = $region9
  $region8: #{kge_forward.1} parent=0 // pred_region
    _
  $region9: #{kge_forward.1} parent=0 // pred_fallthru
    _
  // Predicated region
  $region10: #{kge_forward.1} parent=0 // pred_check
    _
  $region11: #{kge_forward.1} parent=0 // pred_check_branch
    %13 = sbr.rel (0) target = $region13
  $region12: #{kge_forward.1} parent=0 // pred_region
    _
  $region13: #{kge_forward.1} parent=0 // pred_fallthru
    _
  %v14 = vld [vmem:[%s0] sm:$0xff]
  %v15 = vld [vmem:[%s0 + $0x8] sm:$0xff]
  %v16 = vld [vmem:[%s1] sm:$0xff]
  %v17 = vld [vmem:[%s1 + $0x8] sm:$0xff]
  %v18 = vld [vmem:[%s2] sm:$0xff]
  %v19 = vld [vmem:[%s2 + $0x8] sm:$0xff]
  %v20 = vadd.f32 %v14, %v16
  %v21 = vadd.f32 %v15, %v17
  %v22 = vsub.f32 %v20, %v18
  %v23 = vsub.f32 %v21, %v19
  %v24 = vand.u32 2147483647, %v22
  %v25 = vand.u32 2147483647, %v23
  %26 = vadd.xlane.f32.xlu0 %v24
  %v27 = vpop.xlane.xlu0 %26
  %28 = vadd.xlane.f32.xlu0 %v25
  %v29 = vpop.xlane.xlu0 %28
  %v30 = vsub.f32 12.0, %v27
  %v31 = vsub.f32 12.0, %v29
  %vm32 = vcmask 7168
  %33 = vst.msk [vmem:[%s3] sm:$0xff] %vm32, %v30
  %34 = vst.msk [vmem:[%s3 + $0x8] sm:$0xff] %vm32, %v31
  // Predicated region
  $region14: #{kge_forward.1} parent=0 // pred_check
    _
  $region15: #{kge_forward.1} parent=0 // pred_check_branch
    %36 = sbr.rel (0) target = $region17
  $region16: #{kge_forward.1} parent=0 // pred_region
    _
  $region17: #{kge_forward.1} parent=0 // pred_fallthru
    _
  // Predicated region
  $region18: #{kge_forward.1} parent=0 // pred_check
    _
  $region19: #{kge_forward.1} parent=0 // pred_check_branch
    %38 = sbr.rel (0) target = $region21
  $region20: #{kge_forward.1} parent=0 // pred_region
    _
  $region21: #{kge_forward.1} parent=0 // pred_fallthru
    _

</llo_original>
